<compile_context>
chip_gen: v5e
topology: v5e:2x2
jax: 0.10.0
libtpu: 0.0.40
codegen_flags: <defaults>
</compile_context>

<pallas_src>
import jax
import jax.numpy as jnp
from jax.experimental import pallas as pl
from jax.experimental.pallas import tpu as pltpu


_LANE = 128    # lane width (last dim)
_SUBLANE = 8   # sublane width (second-to-last dim)
_NEG_BIG = -1e30  # finite "-inf" used to pad invalid output lanes of b2


def _round_up(n, m):
    return ((n + m - 1) // m) * m


def _mlp_logprobs(x_ref, w1_ref, b1_ref, w2_ref, b2_ref):
    """Shared body: (tb, out_p) f32 log-probabilities for one batch tile."""
    x_bf = x_ref[...].astype(jnp.bfloat16)  # cast on VPU; x arrives as f32
    # linear1 (bf16 operands, f32 MXU accumulation) + bias + ReLU in f32
    h = jnp.dot(x_bf, w1_ref[...], preferred_element_type=jnp.float32)
    h = jnp.maximum(h + b1_ref[...], 0.0)
    # linear2
    logits = jnp.dot(h.astype(w2_ref.dtype), w2_ref[...],
                     preferred_element_type=jnp.float32)
    # b2 carries -1e30 on padded output lanes (w2 pad columns are zero), so the
    # padded lanes drop out of the softmax normalizer with no in-kernel mask.
    logits = logits + b2_ref[...]
    # log_softmax over the last axis (dim=1)
    m = jnp.max(logits, axis=-1, keepdims=True)
    shifted = logits - m
    lse = jnp.log(jnp.sum(jnp.exp(shifted), axis=-1, keepdims=True))
    return shifted - lse


def _logprobs_kernel(x_ref, w1_ref, b1_ref, w2_ref, b2_ref, out_ref):
    out_ref[...] = _mlp_logprobs(x_ref, w1_ref, b1_ref, w2_ref,
                                 b2_ref).astype(out_ref.dtype)


def _nll_kernel(x_ref, w1_ref, b1_ref, w2_ref, b2_ref, y_ref, nll_ref):
    logp = _mlp_logprobs(x_ref, w1_ref, b1_ref, w2_ref, b2_ref)        # (tb, out_p)
    lane = jax.lax.broadcasted_iota(jnp.int32, logp.shape, dimension=1)
    onehot = (lane == y_ref[...]).astype(jnp.float32)                  # (tb,1) bcast
    # Pad lanes: onehot == 0 there (y < OUT), and logp is finite, so the product is 0.
    nll_ref[...] = -jnp.sum(logp * onehot, axis=-1, keepdims=True)     # (tb, 1)


def _prepare(x, w1, b1, w2, b2, block_b, min_grid_steps):
    B, IN = x.shape
    HID = w1.shape[1]
    OUT = w2.shape[1]

    hid_p = _round_up(HID, _LANE)
    out_p = _round_up(OUT, _LANE)  # keep exactly one 128-lane vreg of output

    # Weights/biases: tiny, cast/pad once in the wrapper; VMEM-resident in-kernel.
    w1_p = jnp.pad(w1, ((0, 0), (0, hid_p - HID))).astype(jnp.bfloat16)
    b1_p = jnp.pad(b1.astype(jnp.float32), (0, hid_p - HID)).reshape(1, hid_p)
    w2_p = jnp.pad(w2, ((0, hid_p - HID), (0, out_p - OUT))).astype(jnp.bfloat16)
    b2_p = jnp.pad(b2.astype(jnp.float32), (0, out_p - OUT),
                   constant_values=_NEG_BIG).reshape(1, out_p)

    # Batch tile: big enough to amortize per-step overhead (up to block_b rows),
    # but never so big that a 2-TC chip (v7x) gets a single grid step.
    tb = _round_up(max(1, pl.cdiv(B, min_grid_steps)), _SUBLANE)
    tb = min(tb, _round_up(block_b, _SUBLANE))
    tb = max(tb, _SUBLANE)
    b_pad = _round_up(B, tb)
    x_p = jnp.pad(x.astype(jnp.float32), ((0, b_pad - B), (0, 0)))
    return x_p, w1_p, b1_p, w2_p, b2_p, tb, b_pad, IN, hid_p, out_p, OUT


def multi_classification_forward(x, w1, b1, w2, b2, y=None, *,
                                 block_b=1024, min_grid_steps=2):
    """Forward pass of MultiClassficationModel.

    y is None : returns (B, output_size) f32 log-probabilities.
    y given   : returns scalar cross-entropy loss (mean NLL), with the per-row
                NLL gather fused into the kernel.
    """
    B = x.shape[0]
    (x_p, w1_p, b1_p, w2_p, b2_p,
     tb, b_pad, IN, hid_p, out_p, OUT) = _prepare(x, w1, b1, w2, b2,
                                                  block_b, min_grid_steps)
    grid = (b_pad // tb,)

    # Per-step VMEM (tb=1024): x 128 KiB + dense out 512 KiB (double-buffered) plus
    # ~40 KiB of resident weights -- far below even v5e's 16 MiB scoped default.
    x_spec = pl.BlockSpec((tb, IN), lambda i: (i, 0))          # tiled over batch
    weight_specs = [
        pl.BlockSpec((IN, hid_p), lambda i: (0, 0)),           # w1: VMEM-resident
        pl.BlockSpec((1, hid_p), lambda i: (0, 0)),            # b1
        pl.BlockSpec((hid_p, out_p), lambda i: (0, 0)),        # w2
        pl.BlockSpec((1, out_p), lambda i: (0, 0)),            # b2 (-1e30 pad lanes)
    ]
    cparams = pltpu.CompilerParams(dimension_semantics=("parallel",))

    if y is None:
        out_padded = pl.pallas_call(
            _logprobs_kernel,
            out_shape=jax.ShapeDtypeStruct((b_pad, out_p), jnp.float32),
            grid=grid,
            in_specs=[x_spec] + weight_specs,
            out_specs=pl.BlockSpec((tb, out_p), lambda i: (i, 0)),
            compiler_params=cparams,
        )(x_p, w1_p, b1_p, w2_p, b2_p)
        return out_padded[:B, :OUT]

    # Training path: fused per-row NLL, (b_pad, 1) output column.
    # torch's cross_entropy re-applies log_softmax, which is the identity on
    # already-normalized log-probs, so the loss is exactly -mean(logp[i, y_i]).
    y_col = jnp.pad(y.astype(jnp.int32), (0, b_pad - B)).reshape(b_pad, 1)
    nll = pl.pallas_call(
        _nll_kernel,
        out_shape=jax.ShapeDtypeStruct((b_pad, 1), jnp.float32),
        grid=grid,
        in_specs=[x_spec] + weight_specs + [pl.BlockSpec((tb, 1), lambda i: (i, 0))],
        out_specs=pl.BlockSpec((tb, 1), lambda i: (i, 0)),
        compiler_params=cparams,
    )(x_p, w1_p, b1_p, w2_p, b2_p, y_col)
    return jnp.mean(nll[:B, 0])


if __name__ == "__main__":
    # Module-consistent small shapes: input_size=32, hidden_size=64, output_size=5.
    # B=512 with min_grid_steps=2 -> tb=256, a 2-step "parallel" grid (pipelining +
    # both v7x TensorCores exercised).
    B, IN, HID, OUT = 512, 32, 64, 5
    key = jax.random.PRNGKey(0)
    kx, kw1, kb1, kw2, kb2, ky = jax.random.split(key, 6)

    x = jax.random.normal(kx, (B, IN), dtype=jnp.float32)
    # PyTorch nn.Linear-shaped params, stored transposed (in_features, out_features).
    w1 = jax.random.normal(kw1, (IN, HID), dtype=jnp.float32) * (1.0 / jnp.sqrt(IN))
    b1 = jax.random.normal(kb1, (HID,), dtype=jnp.float32) * 0.01
    w2 = jax.random.normal(kw2, (HID, OUT), dtype=jnp.float32) * (1.0 / jnp.sqrt(HID))
    b2 = jax.random.normal(kb2, (OUT,), dtype=jnp.float32) * 0.01
    y = jax.random.randint(ky, (B,), 0, OUT)

    # y=None branch: dense log-probabilities.
    y_pred = jax.block_until_ready(multi_classification_forward(x, w1, b1, w2, b2))
    assert y_pred.shape == (B, OUT)

    # y given branch: fused cross-entropy loss.
    loss = jax.block_until_ready(multi_classification_forward(x, w1, b1, w2, b2, y))

    # Reference 1: mirrors the kernel's bf16-operand / f32-accumulate matmuls.
    h_ref = jnp.maximum(
        jnp.dot(x.astype(jnp.bfloat16), w1.astype(jnp.bfloat16),
                preferred_element_type=jnp.float32) + b1, 0.0)
    logits_ref = jnp.dot(h_ref.astype(jnp.bfloat16), w2.astype(jnp.bfloat16),
                         preferred_element_type=jnp.float32) + b2
    ref_bf16 = jax.nn.log_softmax(logits_ref, axis=1)
    assert jnp.allclose(y_pred, ref_bf16, atol=1e-4, rtol=1e-4), "mismatch vs bf16 reference"

    # Reference 2: pure f32 reference (loose sanity check on bf16 rounding).
    ref_f32 = jax.nn.log_softmax(jnp.maximum(x @ w1 + b1, 0.0) @ w2 + b2, axis=1)
    assert jnp.allclose(y_pred, ref_f32, atol=5e-2, rtol=5e-2), "mismatch vs f32 reference"

    # Loss reference: NLL on the bf16 reference log-probs (== torch cross_entropy
    # of log_softmax output, since the second log_softmax is a no-op).
    ref_loss = -jnp.mean(jnp.take_along_axis(ref_bf16, y[:, None], axis=1)[:, 0])
    assert jnp.allclose(loss, ref_loss, atol=1e-4, rtol=1e-4), "loss mismatch"
    assert bool(jnp.isfinite(loss))

    print("KERNEL_OK")
</pallas_src>

<mosaic_0001>
module attributes {stable_mosaic.version = 11 : i64} {
  func.func @_logprobs_kernel(%arg0: i32, %arg1: memref<256x32xf32, #tpu.memory_space<vmem>>, %arg2: memref<32x128xbf16, #tpu.memory_space<vmem>>, %arg3: memref<1x128xf32, #tpu.memory_space<vmem>>, %arg4: memref<128x128xbf16, #tpu.memory_space<vmem>>, %arg5: memref<1x128xf32, #tpu.memory_space<vmem>>, %arg6: memref<256x128xf32, #tpu.memory_space<vmem>>) attributes {dimension_semantics = [#tpu.dimension_semantics<parallel>], iteration_bounds = array<i64: 2>, scalar_prefetch = 0 : i64, scratch_operands = 0 : i64, tpu.core_type = #tpu.core_type<tc>, window_params = [{transform_indices = @transform_0, window_bounds = array<i64: 256, 32>}, {pipeline_mode = #tpu.pipeline_mode<synchronous>, transform_indices = @transform_1, window_bounds = array<i64: 32, 128>}, {pipeline_mode = #tpu.pipeline_mode<synchronous>, transform_indices = @transform_2, window_bounds = array<i64: 1, 128>}, {pipeline_mode = #tpu.pipeline_mode<synchronous>, transform_indices = @transform_3, window_bounds = array<i64: 128, 128>}, {pipeline_mode = #tpu.pipeline_mode<synchronous>, transform_indices = @transform_4, window_bounds = array<i64: 1, 128>}, {transform_indices = @transform_5, window_bounds = array<i64: 256, 128>}]} {
    %c0 = arith.constant 0 : index
    %c0_0 = arith.constant 0 : index
    %0 = vector.load %arg1[%c0, %c0_0] : memref<256x32xf32, #tpu.memory_space<vmem>>, vector<256x32xf32>
    %1 = arith.truncf %0 : vector<256x32xf32> to vector<256x32xbf16>
    %c0_1 = arith.constant 0 : index
    %c0_2 = arith.constant 0 : index
    %2 = vector.load %arg2[%c0_1, %c0_2] : memref<32x128xbf16, #tpu.memory_space<vmem>>, vector<32x128xbf16>
    %cst = arith.constant dense<0.000000e+00> : vector<256x128xf32>
    %3 = tpu.matmul %1, %2, %cst {dimension_numbers = #tpu.dot_dimension_numbers<[1], [0], [0], [1], [0, 0, 1, 1], [], []>} : vector<256x32xbf16>, vector<32x128xbf16>, vector<256x128xf32> -> vector<256x128xf32>
    %c0_3 = arith.constant 0 : index
    %c0_4 = arith.constant 0 : index
    %4 = vector.load %arg3[%c0_3, %c0_4] : memref<1x128xf32, #tpu.memory_space<vmem>>, vector<1x128xf32>
    %5 = vector.broadcast %4 : vector<1x128xf32> to vector<256x128xf32>
    %6 = arith.addf %3, %5 : vector<256x128xf32>
    %cst_5 = arith.constant 0.000000e+00 : f32
    %7 = vector.broadcast %cst_5 : f32 to vector<256x128xf32>
    %8 = arith.maximumf %6, %7 : vector<256x128xf32>
    %9 = arith.truncf %8 : vector<256x128xf32> to vector<256x128xbf16>
    %c0_6 = arith.constant 0 : index
    %c0_7 = arith.constant 0 : index
    %10 = vector.load %arg4[%c0_6, %c0_7] : memref<128x128xbf16, #tpu.memory_space<vmem>>, vector<128x128xbf16>
    %cst_8 = arith.constant dense<0.000000e+00> : vector<256x128xf32>
    %11 = tpu.matmul %9, %10, %cst_8 {dimension_numbers = #tpu.dot_dimension_numbers<[1], [0], [0], [1], [0, 0, 1, 1], [], []>} : vector<256x128xbf16>, vector<128x128xbf16>, vector<256x128xf32> -> vector<256x128xf32>
    %c0_9 = arith.constant 0 : index
    %c0_10 = arith.constant 0 : index
    %12 = vector.load %arg5[%c0_9, %c0_10] : memref<1x128xf32, #tpu.memory_space<vmem>>, vector<1x128xf32>
    %13 = vector.broadcast %12 : vector<1x128xf32> to vector<256x128xf32>
    %14 = arith.addf %11, %13 : vector<256x128xf32>
    %cst_11 = arith.constant dense<0xFF800000> : vector<256xf32>
    %15 = vector.multi_reduction <maximumf>, %14, %cst_11 [1] : vector<256x128xf32> to vector<256xf32>
    %16 = vector.shape_cast %15 : vector<256xf32> to vector<256x1xf32>
    %17 = vector.broadcast %16 : vector<256x1xf32> to vector<256x128xf32>
    %18 = arith.subf %14, %17 : vector<256x128xf32>
    %19 = math.exp %18 : vector<256x128xf32>
    %cst_12 = arith.constant dense<0.000000e+00> : vector<256xf32>
    %20 = vector.multi_reduction <add>, %19, %cst_12 [1] : vector<256x128xf32> to vector<256xf32>
    %21 = vector.shape_cast %20 : vector<256xf32> to vector<256x1xf32>
    %22 = math.log %21 : vector<256x1xf32>
    %23 = vector.broadcast %22 : vector<256x1xf32> to vector<256x128xf32>
    %24 = arith.subf %18, %23 : vector<256x128xf32>
    %c0_13 = arith.constant 0 : index
    %c0_14 = arith.constant 0 : index
    %25 = vector.load %arg6[%c0_13, %c0_14] : memref<256x128xf32, #tpu.memory_space<vmem>>, vector<256x128xf32>
    tpu.vector_store %arg6[%c0_13, %c0_14], %24 {strides = array<i32>} : memref<256x128xf32, #tpu.memory_space<vmem>>, vector<256x128xf32>,
    return
  }
  func.func @transform_0(%arg0: i32) -> (i32, i32) {
    %c0_i32 = arith.constant 0 : i32
    %c0_i32_0 = arith.constant 0 : i32
    return %arg0, %c0_i32 : i32, i32
  }
  func.func @transform_1(%arg0: i32) -> (i32, i32) {
    %c0_i32 = arith.constant 0 : i32
    %c0_i32_0 = arith.constant 0 : i32
    %c0_i32_1 = arith.constant 0 : i32
    return %c0_i32, %c0_i32_0 : i32, i32
  }
  func.func @transform_2(%arg0: i32) -> (i32, i32) {
    %c0_i32 = arith.constant 0 : i32
    %c0_i32_0 = arith.constant 0 : i32
    %c0_i32_1 = arith.constant 0 : i32
    return %c0_i32, %c0_i32_0 : i32, i32
  }
  func.func @transform_3(%arg0: i32) -> (i32, i32) {
    %c0_i32 = arith.constant 0 : i32
    %c0_i32_0 = arith.constant 0 : i32
    %c0_i32_1 = arith.constant 0 : i32
    return %c0_i32, %c0_i32_0 : i32, i32
  }
  func.func @transform_4(%arg0: i32) -> (i32, i32) {
    %c0_i32 = arith.constant 0 : i32
    %c0_i32_0 = arith.constant 0 : i32
    %c0_i32_1 = arith.constant 0 : i32
    return %c0_i32, %c0_i32_0 : i32, i32
  }
  func.func @transform_5(%arg0: i32) -> (i32, i32) {
    %c0_i32 = arith.constant 0 : i32
    %c0_i32_0 = arith.constant 0 : i32
    return %arg0, %c0_i32 : i32, i32
  }
}

</mosaic_0001>

<llo_original>
// kernel: tpu_custom_call.1
$region0: #{tpu_custom_call.1}
  #allocation0 [shape = 'u32[]', space=smem, size = 0x4, offset = 0x4, fixed_abs, tag = 'smem constant byte address 0x4 - core index']
  #allocation1 [shape = 'u32[72,128]{1,0:T(1,128)}', space=vmem, size = 0x9000, scoped, tag = 'internal scratch']
  %s0 = inlined_call_operand.vmem [shape: f32[512,32], index: 0, kind: input, shape index: {}]
  %s1 = inlined_call_operand.vmem [shape: bf16[32,128], index: 1, kind: input, shape index: {}]
  %s2 = inlined_call_operand.vmem [shape: f32[1,128], index: 2, kind: input, shape index: {}]
  %s3 = inlined_call_operand.vmem [shape: bf16[128,128], index: 3, kind: input, shape index: {}]
  %s4 = inlined_call_operand.vmem [shape: f32[1,128], index: 4, kind: input, shape index: {}]
  %s5 = inlined_call_operand.hbm [shape: f32[512,128], index: 5, kind: output, shape index: {}]
  %s6 = sld [smem:[#allocation0]]
  $region53: #{tpu_custom_call.1} parent=0
    _
  %s8 = ssub.s32 1, %s6
  %s9 = scalar_select 0, %s8, %s6
  $region1: #{tpu_custom_call.1} parent=0
    #allocation2 [shape = 'u8[262144]{0}', space=vmem, size = 0x40000, scoped, tag = 'output window, operand 0']
    #allocation3 [shape = 's32[2]{0}', space=sflag, size = 0x8, scoped, tag = 'scoped memory for tpu_custom_call.1']
    %10 = vsyncpa [#allocation3], 0
    %s11 = scalar_lea.sflag [#allocation3], 1
    %12 = vsyncpa %s11, 0
    loop: start=0, step=1, limit=4
    $region2: #{tpu_custom_call.1} parent=1 // loop_pre_header
      _
    $region3: #{tpu_custom_call.1} parent=1 // loop_header
      %s14 = sphi 0, %s18
      %p15 = scmp.ge.s32.totalorder %s14, 4
      %s24 = sphi 0, %s26
      %s27 = sphi 0, %s24
      %s28 = sphi 0, %s27
      %s44 = sphi 0, %s28
      %s48 = sphi 0, %s48
      %s50 = sphi 0, %s48
      %s51 = sphi 0, %s50
      %s65 = sphi 0, %s51
      %s69 = sphi 0, %s69
      %s71 = sphi 0, %s69
      %s72 = sphi 0, %s71
      %s86 = sphi 0, %s72
      %s90 = sphi 0, %s90
      %s92 = sphi 0, %s90
      %s93 = sphi 0, %s92
      %s107 = sphi 0, %s93
      %s111 = sphi 0, %s111
      %s113 = sphi 0, %s111
      %s114 = sphi 0, %s113
      %s128 = sphi 0, %s114
      %s134 = sphi 0, %s136
      %s137 = sphi 0, %s134
      %s138 = sphi 0, %s137
      %s154 = sphi 0, %s138
    $region4: #{tpu_custom_call.1} parent=1 // loop_header_branch
      %17 = sbr.rel (%p15) target = $region8
    $region5: #{tpu_custom_call.1} parent=1 // loop_body
      %s19 = ssub.s32 %s14, 1
      %s20 = ssub.s32 %s14, 2
      %s21 = sadd.s32 %s14, 1
      %s22 = ssub.s32 %s14, %s21
      %p23 = scmp.eq.s32.totalorder %s22, 0
      %s25 = sadd.s32 %s24, 1
      %s26 = scalar_select %p23, %s24, %s25
      %p29 = pneg %p23
      %p30 = scmp.eq.s32.totalorder %s14, 1
      %p31 = por %p29, %p30
      %p32 = scmp.ne.s32.totalorder %s24, %s27
      %p33 = scmp.eq.s32.totalorder %s14, 0
      %p34 = por %p32, %p33
      %p35 = scmp.ne.s32.totalorder %s24, %s27
      %p36 = scmp.eq.s32.totalorder %s19, 1
      %p37 = por %p35, %p36
      %p38 = scmp.ne.s32.totalorder %s27, %s28
      %p39 = scmp.eq.s32.totalorder %s19, 0
      %p40 = por %p38, %p39
      %p41 = scmp.ne.s32.totalorder %s27, %s28
      %p42 = scmp.eq.s32.totalorder %s20, 1
      %p43 = por %p41, %p42
      %p45 = scmp.ne.s32.totalorder %s28, %s44
      %p46 = scmp.eq.s32.totalorder %s20, 0
      %p47 = por %p45, %p46
      %s49 = sadd.s32 %s48, 1
      %p52 = scmp.eq.s32.totalorder %s14, 1
      %p53 = scmp.ne.s32.totalorder %s48, %s50
      %p54 = scmp.eq.s32.totalorder %s14, 0
      %p55 = por %p53, %p54
      %p56 = scmp.ne.s32.totalorder %s48, %s50
      %p57 = scmp.eq.s32.totalorder %s19, 1
      %p58 = por %p56, %p57
      %p59 = scmp.ne.s32.totalorder %s50, %s51
      %p60 = scmp.eq.s32.totalorder %s19, 0
      %p61 = por %p59, %p60
      %p62 = scmp.ne.s32.totalorder %s50, %s51
      %p63 = scmp.eq.s32.totalorder %s20, 1
      %p64 = por %p62, %p63
      %p66 = scmp.ne.s32.totalorder %s51, %s65
      %p67 = scmp.eq.s32.totalorder %s20, 0
      %p68 = por %p66, %p67
      %s70 = sadd.s32 %s69, 1
      %p73 = scmp.eq.s32.totalorder %s14, 1
      %p74 = scmp.ne.s32.totalorder %s69, %s71
      %p75 = scmp.eq.s32.totalorder %s14, 0
      %p76 = por %p74, %p75
      %p77 = scmp.ne.s32.totalorder %s69, %s71
      %p78 = scmp.eq.s32.totalorder %s19, 1
      %p79 = por %p77, %p78
      %p80 = scmp.ne.s32.totalorder %s71, %s72
      %p81 = scmp.eq.s32.totalorder %s19, 0
      %p82 = por %p80, %p81
      %p83 = scmp.ne.s32.totalorder %s71, %s72
      %p84 = scmp.eq.s32.totalorder %s20, 1
      %p85 = por %p83, %p84
      %p87 = scmp.ne.s32.totalorder %s72, %s86
      %p88 = scmp.eq.s32.totalorder %s20, 0
      %p89 = por %p87, %p88
      %s91 = sadd.s32 %s90, 1
      %p94 = scmp.eq.s32.totalorder %s14, 1
      %p95 = scmp.ne.s32.totalorder %s90, %s92
      %p96 = scmp.eq.s32.totalorder %s14, 0
      %p97 = por %p95, %p96
      %p98 = scmp.ne.s32.totalorder %s90, %s92
      %p99 = scmp.eq.s32.totalorder %s19, 1
      %p100 = por %p98, %p99
      %p101 = scmp.ne.s32.totalorder %s92, %s93
      %p102 = scmp.eq.s32.totalorder %s19, 0
      %p103 = por %p101, %p102
      %p104 = scmp.ne.s32.totalorder %s92, %s93
      %p105 = scmp.eq.s32.totalorder %s20, 1
      %p106 = por %p104, %p105
      %p108 = scmp.ne.s32.totalorder %s93, %s107
      %p109 = scmp.eq.s32.totalorder %s20, 0
      %p110 = por %p108, %p109
      %s112 = sadd.s32 %s111, 1
      %p115 = scmp.eq.s32.totalorder %s14, 1
      %p116 = scmp.ne.s32.totalorder %s111, %s113
      %p117 = scmp.eq.s32.totalorder %s14, 0
      %p118 = por %p116, %p117
      %p119 = scmp.ne.s32.totalorder %s111, %s113
      %p120 = scmp.eq.s32.totalorder %s19, 1
      %p121 = por %p119, %p120
      %p122 = scmp.ne.s32.totalorder %s113, %s114
      %p123 = scmp.eq.s32.totalorder %s19, 0
      %p124 = por %p122, %p123
      %p125 = scmp.ne.s32.totalorder %s113, %s114
      %p126 = scmp.eq.s32.totalorder %s20, 1
      %p127 = por %p125, %p126
      %p129 = scmp.ne.s32.totalorder %s114, %s128
      %p130 = scmp.eq.s32.totalorder %s20, 0
      %p131 = por %p129, %p130
      %s132 = ssub.s32 %s14, %s21
      %p133 = scmp.eq.s32.totalorder %s132, 0
      %s135 = sadd.s32 %s134, 1
      %s136 = scalar_select %p133, %s134, %s135
      %p139 = pneg %p133
      %p140 = scmp.eq.s32.totalorder %s14, 1
      %p141 = por %p139, %p140
      %p142 = scmp.ne.s32.totalorder %s134, %s137
      %p143 = scmp.eq.s32.totalorder %s14, 0
      %p144 = por %p142, %p143
      %p145 = scmp.ne.s32.totalorder %s134, %s137
      %p146 = scmp.eq.s32.totalorder %s19, 1
      %p147 = por %p145, %p146
      %p148 = scmp.ne.s32.totalorder %s137, %s138
      %p149 = scmp.eq.s32.totalorder %s19, 0
      %p150 = por %p148, %p149
      %p151 = scmp.ne.s32.totalorder %s137, %s138
      %p152 = scmp.eq.s32.totalorder %s20, 1
      %p153 = por %p151, %p152
      %p155 = scmp.ne.s32.totalorder %s138, %s154
      %p156 = scmp.eq.s32.totalorder %s20, 0
      %p157 = por %p155, %p156
      %p158 = scmp.le.s32.totalorder 1, %s14
      %p159 = scmp.lt.s32.totalorder %s14, 3
      %p160 = pnand %p158, %p159
      %p161 = pneg %p160
      // Predicated region
      $region9: #{tpu_custom_call.1} parent=5 // pred_check
        _
      $region10: #{tpu_custom_call.1} parent=5 // pred_check_branch
        %163 = sbr.rel (%p160) target = $region12
      $region11: #{tpu_custom_call.1} parent=5 // pred_region
        %s164 = ssub.s32 %s14, 1
        // Predicated region
        $region13: #{tpu_custom_call.1} parent=11 // pred_check
          %p165 = pneg %p61
        $region14: #{tpu_custom_call.1} parent=11 // pred_check_branch
          %167 = sbr.rel (%p165) target = $region16
        $region15: #{tpu_custom_call.1} parent=11 // pred_region
          _
        $region16: #{tpu_custom_call.1} parent=11 // pred_fallthru
          _
        // Predicated region
        $region17: #{tpu_custom_call.1} parent=11 // pred_check
          %p168 = pneg %p82
        $region18: #{tpu_custom_call.1} parent=11 // pred_check_branch
          %170 = sbr.rel (%p168) target = $region20
        $region19: #{tpu_custom_call.1} parent=11 // pred_region
          _
        $region20: #{tpu_custom_call.1} parent=11 // pred_fallthru
          _
        // Predicated region
        $region21: #{tpu_custom_call.1} parent=11 // pred_check
          %p171 = pneg %p103
        $region22: #{tpu_custom_call.1} parent=11 // pred_check_branch
          %173 = sbr.rel (%p171) target = $region24
        $region23: #{tpu_custom_call.1} parent=11 // pred_region
          _
        $region24: #{tpu_custom_call.1} parent=11 // pred_fallthru
          _
        // Predicated region
        $region25: #{tpu_custom_call.1} parent=11 // pred_check
          %p174 = pneg %p124
        $region26: #{tpu_custom_call.1} parent=11 // pred_check_branch
          %176 = sbr.rel (%p174) target = $region28
        $region27: #{tpu_custom_call.1} parent=11 // pred_region
          _
        $region28: #{tpu_custom_call.1} parent=11 // pred_fallthru
          _
      $region12: #{tpu_custom_call.1} parent=5 // pred_fallthru
        _
      %p177 = scmp.lt.s32.totalorder %s14, 2
      // Predicated region
      $region29: #{tpu_custom_call.1} parent=5 // pred_check
        %p178 = pneg %p177
      $region30: #{tpu_custom_call.1} parent=5 // pred_check_branch
        %180 = sbr.rel (%p178) target = $region32
      $region31: #{tpu_custom_call.1} parent=5 // pred_region
        // Predicated region
        $region33: #{tpu_custom_call.1} parent=31 // pred_check
          %p181 = pneg %p34
        $region34: #{tpu_custom_call.1} parent=31 // pred_check_branch
          %183 = sbr.rel (%p181) target = $region36
        $region35: #{tpu_custom_call.1} parent=31 // pred_region
          %s184 = smul.u32 32, %s14
          %p185 = scmp.lt.s32.totalorder %s184, 63
          %s186 = scalar_select %p185, %s184, 63
          %s187 = smul.addr %s186, 8
          %s188 = scalar_lea.vmem %s0, %s187
          %s189 = smul.u32 32, %s14
        $region36: #{tpu_custom_call.1} parent=31 // pred_fallthru
          _
      $region32: #{tpu_custom_call.1} parent=5 // pred_fallthru
        _
      %p190 = scmp.le.s32.totalorder 1, %s14
      %p191 = scmp.lt.s32.totalorder %s14, 3
      %p192 = pnand %p190, %p191
      %p193 = pneg %p192
      // Predicated region
      $region37: #{tpu_custom_call.1} parent=5 // pred_check
        _
      $region38: #{tpu_custom_call.1} parent=5 // pred_check_branch
        %195 = sbr.rel (%p192) target = $region40
      $region39: #{tpu_custom_call.1} parent=5 // pred_region
        %s196 = ssub.s32 %s14, 1
        %s197 = smul.u32 32, %s19
        %p198 = scmp.lt.s32.totalorder %s197, 63
        %s199 = scalar_select %p198, %s197, 63
        %s200 = smul.addr %s199, 8
        %s201 = scalar_lea.vmem %s0, %s200
        %p202 = pneg %p40
        %p203 = pneg %p37
        %p204 = pneg %p61
        %p205 = pneg %p58
        %p206 = pneg %p82
        %p207 = pneg %p79
        %p208 = pneg %p103
        %p209 = pneg %p100
        %p210 = pneg %p124
        %p211 = pneg %p121
        %p212 = pneg %p150
        %p213 = pneg %p147
        %s214 = sand.u32 %s137, 1
        %s215 = scalar_lea.sflag [#allocation3], %s214
        %s216 = sand.u32 %s137, 1
        %s217 = smul.addr %s216, 256
        %s218 = scalar_lea.vmem [#allocation2], %s217
        %s219 = smul.u32 32, %s19
        %p220 = scmp.lt.s32.totalorder %s219, 63
        %s221 = scalar_select %p220, %s219, 63
        %s222 = smul.addr %s221, 8
        %s223 = scalar_lea.vmem %s0, %s222
        %s224 = smul.u32 32, %s19
        %s225 = smul.u32 32, %s19
        %v227 = vld [vmem:[%s223] sm:$0xff]
        %v228 = vld [vmem:[%s223 + $0x8] sm:$0xff]
        %v229 = vld [vmem:[%s223 + $0x10] sm:$0xff]
        %v230 = vld [vmem:[%s223 + $0x18] sm:$0xff]
        %v231 = vld [vmem:[%s223 + $0x20] sm:$0xff]
        %v232 = vld [vmem:[%s223 + $0x28] sm:$0xff]
        %v233 = vld [vmem:[%s223 + $0x30] sm:$0xff]
        %v234 = vld [vmem:[%s223 + $0x38] sm:$0xff]
        %v235 = vld [vmem:[%s223 + $0x40] sm:$0xff]
        %v236 = vld [vmem:[%s223 + $0x48] sm:$0xff]
        %v237 = vld [vmem:[%s223 + $0x50] sm:$0xff]
        %v238 = vld [vmem:[%s223 + $0x58] sm:$0xff]
        %v239 = vld [vmem:[%s223 + $0x60] sm:$0xff]
        %v240 = vld [vmem:[%s223 + $0x68] sm:$0xff]
        %v241 = vld [vmem:[%s223 + $0x70] sm:$0xff]
        %v242 = vld [vmem:[%s223 + $0x78] sm:$0xff]
        %v243 = vld [vmem:[%s223 + $0x80] sm:$0xff]
        %v244 = vld [vmem:[%s223 + $0x88] sm:$0xff]
        %v245 = vld [vmem:[%s223 + $0x90] sm:$0xff]
        %v246 = vld [vmem:[%s223 + $0x98] sm:$0xff]
        %v247 = vld [vmem:[%s223 + $0xa0] sm:$0xff]
        %v248 = vld [vmem:[%s223 + $0xa8] sm:$0xff]
        %v249 = vld [vmem:[%s223 + $0xb0] sm:$0xff]
        %v250 = vld [vmem:[%s223 + $0xb8] sm:$0xff]
        %v251 = vld [vmem:[%s223 + $0xc0] sm:$0xff]
        %v252 = vld [vmem:[%s223 + $0xc8] sm:$0xff]
        %v253 = vld [vmem:[%s223 + $0xd0] sm:$0xff]
        %v254 = vld [vmem:[%s223 + $0xd8] sm:$0xff]
        %v255 = vld [vmem:[%s223 + $0xe0] sm:$0xff]
        %v256 = vld [vmem:[%s223 + $0xe8] sm:$0xff]
        %v257 = vld [vmem:[%s223 + $0xf0] sm:$0xff]
        %v258 = vld [vmem:[%s223 + $0xf8] sm:$0xff]
        %v259 = vpack.c.bf16 %v228, %v227
        %v260 = vpack.c.bf16 %v230, %v229
        %v261 = vpack.c.bf16 %v232, %v231
        %v262 = vpack.c.bf16 %v234, %v233
        %v263 = vpack.c.bf16 %v236, %v235
        %v264 = vpack.c.bf16 %v238, %v237
        %v265 = vpack.c.bf16 %v240, %v239
        %v266 = vpack.c.bf16 %v242, %v241
        %v267 = vpack.c.bf16 %v244, %v243
        %v268 = vpack.c.bf16 %v246, %v245
        %v269 = vpack.c.bf16 %v248, %v247
        %v270 = vpack.c.bf16 %v250, %v249
        %v271 = vpack.c.bf16 %v252, %v251
        %v272 = vpack.c.bf16 %v254, %v253
        %v273 = vpack.c.bf16 %v256, %v255
        %v274 = vpack.c.bf16 %v258, %v257
        %v275 = vld [vmem:[%s1] sm:$0xf]
        %v276 = vld [vmem:[%s1 + $0x4] sm:$0xf]
        %v277 = vld [vmem:[%s1 + $0x8] sm:$0xf]
        %v278 = vld [vmem:[%s1 + $0xc] sm:$0xf]
        %v279 = vld [vmem:[%s2] sm:$0x1]
        %v281 = vperm.slane %v279, 0
        %v287 = vunpack.c.l.b16 %v275
        %v288 = vunpack.c.l.b16 %v276
        %v289 = vunpack.c.l.b16 %v277
        %v290 = vunpack.c.l.b16 %v278
        %v291 = vpack.c.b16 %v288, %v287
        %v292 = vpack.c.b16 %v290, %v289
        %vm295 = vcmask 261120
        %v297 = vsel %vm295, %v259, 0
        %v300 = vsel %vm295, %v260, 0
        %v303 = vsel %vm295, %v261, 0
        %v306 = vsel %vm295, %v262, 0
        %v309 = vsel %vm295, %v263, 0
        %v312 = vsel %vm295, %v264, 0
        %v315 = vsel %vm295, %v265, 0
        %v318 = vsel %vm295, %v266, 0
        %v321 = vsel %vm295, %v267, 0
        %v324 = vsel %vm295, %v268, 0
        %v327 = vsel %vm295, %v269, 0
        %v330 = vsel %vm295, %v270, 0
        %v333 = vsel %vm295, %v271, 0
        %v336 = vsel %vm295, %v272, 0
        %v339 = vsel %vm295, %v273, 0
        %v342 = vsel %vm295, %v274, 0
        %344 = vmatpush.bf16.msra.mxu0 0
        %345 = vmatpush.bf16.msra.mxu0 0
        %346 = vmatpush.bf16.msra.mxu0 0
        %347 = vmatpush.bf16.msra.mxu0 0
        %348 = vmatpush.bf16.msra.mxu0 0
        %349 = vmatpush.bf16.msra.mxu0 0
        %350 = vmatpush.bf16.msra.mxu0 %v292
        %351 = vmatpush.bf16.msra.mxu0 %v291
        %352 = vmatmul.bf16.gmra.mxu0 %v297
        %v353 = vpop.f32.mrf.mxu0
        %v354 = vadd.f32 %v281, %v353
        %v355 = vpop.f32.mrf.mxu0
        %v356 = vadd.f32 %v281, %v355
        %357 = vmatmul.bf16.gmra.mxu0 %v300
        %v358 = vpop.f32.mrf.mxu0
        %v359 = vadd.f32 %v281, %v358
        %v360 = vpop.f32.mrf.mxu0
        %v361 = vadd.f32 %v281, %v360
        %362 = vmatmul.bf16.gmra.mxu0 %v303
        %v363 = vpop.f32.mrf.mxu0
        %v364 = vadd.f32 %v281, %v363
        %v365 = vpop.f32.mrf.mxu0
        %v366 = vadd.f32 %v281, %v365
        %367 = vmatmul.bf16.gmra.mxu0 %v306
        %v368 = vpop.f32.mrf.mxu0
        %v369 = vadd.f32 %v281, %v368
        %v370 = vpop.f32.mrf.mxu0
        %v371 = vadd.f32 %v281, %v370
        %372 = vmatmul.bf16.gmra.mxu0 %v309
        %v373 = vpop.f32.mrf.mxu0
        %v374 = vadd.f32 %v281, %v373
        %v375 = vpop.f32.mrf.mxu0
        %v376 = vadd.f32 %v281, %v375
        %377 = vmatmul.bf16.gmra.mxu0 %v312
        %v378 = vpop.f32.mrf.mxu0
        %v379 = vadd.f32 %v281, %v378
        %v380 = vpop.f32.mrf.mxu0
        %v381 = vadd.f32 %v281, %v380
        %382 = vmatmul.bf16.gmra.mxu0 %v315
        %v383 = vpop.f32.mrf.mxu0
        %v384 = vadd.f32 %v281, %v383
        %v385 = vpop.f32.mrf.mxu0
        %v386 = vadd.f32 %v281, %v385
        %387 = vmatmul.bf16.gmra.mxu0 %v318
        %v388 = vpop.f32.mrf.mxu0
        %v389 = vadd.f32 %v281, %v388
        %v390 = vpop.f32.mrf.mxu0
        %v391 = vadd.f32 %v281, %v390
        %392 = vmatmul.bf16.gmra.mxu0 %v321
        %v393 = vpop.f32.mrf.mxu0
        %v394 = vadd.f32 %v281, %v393
        %v395 = vpop.f32.mrf.mxu0
        %v396 = vadd.f32 %v281, %v395
        %397 = vmatmul.bf16.gmra.mxu0 %v324
        %v398 = vpop.f32.mrf.mxu0
        %v399 = vadd.f32 %v281, %v398
        %v400 = vpop.f32.mrf.mxu0
        %v401 = vadd.f32 %v281, %v400
        %402 = vmatmul.bf16.gmra.mxu0 %v327
        %v403 = vpop.f32.mrf.mxu0
        %v404 = vadd.f32 %v281, %v403
        %v405 = vpop.f32.mrf.mxu0
        %v406 = vadd.f32 %v281, %v405
        %407 = vmatmul.bf16.gmra.mxu0 %v330
        %v408 = vpop.f32.mrf.mxu0
        %v409 = vadd.f32 %v281, %v408
        %v410 = vpop.f32.mrf.mxu0
        %v411 = vadd.f32 %v281, %v410
        %412 = vmatmul.bf16.gmra.mxu0 %v333
        %v413 = vpop.f32.mrf.mxu0
        %v414 = vadd.f32 %v281, %v413
        %v415 = vpop.f32.mrf.mxu0
        %v416 = vadd.f32 %v281, %v415
        %417 = vmatmul.bf16.gmra.mxu0 %v336
        %v418 = vpop.f32.mrf.mxu0
        %v419 = vadd.f32 %v281, %v418
        %v420 = vpop.f32.mrf.mxu0
        %v421 = vadd.f32 %v281, %v420
        %422 = vmatmul.bf16.gmra.mxu0 %v339
        %v423 = vpop.f32.mrf.mxu0
        %v424 = vadd.f32 %v281, %v423
        %v425 = vpop.f32.mrf.mxu0
        %v426 = vadd.f32 %v281, %v425
        %427 = vmatmul.bf16.gmra.mxu0 %v342
        %v428 = vpop.f32.mrf.mxu0
        %v429 = vadd.f32 %v281, %v428
        %v430 = vpop.f32.mrf.mxu0
        %v431 = vadd.f32 %v281, %v430
        %432 = vdwg.mxu0
        %v433 = vmax.f32 %v354, 0.0
        %v434 = vmax.f32 %v356, 0.0
        %v435 = vmax.f32 %v359, 0.0
        %v436 = vmax.f32 %v361, 0.0
        %v437 = vmax.f32 %v364, 0.0
        %v438 = vmax.f32 %v366, 0.0
        %v439 = vmax.f32 %v369, 0.0
        %v440 = vmax.f32 %v371, 0.0
        %v441 = vmax.f32 %v374, 0.0
        %v442 = vmax.f32 %v376, 0.0
        %v443 = vmax.f32 %v379, 0.0
        %v444 = vmax.f32 %v381, 0.0
        %v445 = vmax.f32 %v384, 0.0
        %v446 = vmax.f32 %v386, 0.0
        %v447 = vmax.f32 %v389, 0.0
        %v448 = vmax.f32 %v391, 0.0
        %v449 = vmax.f32 %v394, 0.0
        %v450 = vmax.f32 %v396, 0.0
        %v451 = vmax.f32 %v399, 0.0
        %v452 = vmax.f32 %v401, 0.0
        %v453 = vmax.f32 %v404, 0.0
        %v454 = vmax.f32 %v406, 0.0
        %v455 = vmax.f32 %v409, 0.0
        %v456 = vmax.f32 %v411, 0.0
        %v457 = vmax.f32 %v414, 0.0
        %v458 = vmax.f32 %v416, 0.0
        %v459 = vmax.f32 %v419, 0.0
        %v460 = vmax.f32 %v421, 0.0
        %v461 = vmax.f32 %v424, 0.0
        %v462 = vmax.f32 %v426, 0.0
        %v463 = vmax.f32 %v429, 0.0
        %v464 = vmax.f32 %v431, 0.0
        %v465 = vpack.c.bf16 %v434, %v433
        %v466 = vpack.c.bf16 %v436, %v435
        %v467 = vpack.c.bf16 %v438, %v437
        %v468 = vpack.c.bf16 %v440, %v439
        %v469 = vpack.c.bf16 %v442, %v441
        %v470 = vpack.c.bf16 %v444, %v443
        %v471 = vpack.c.bf16 %v446, %v445
        %v472 = vpack.c.bf16 %v448, %v447
        %v473 = vpack.c.bf16 %v450, %v449
        %v474 = vpack.c.bf16 %v452, %v451
        %v475 = vpack.c.bf16 %v454, %v453
        %v476 = vpack.c.bf16 %v456, %v455
        %v477 = vpack.c.bf16 %v458, %v457
        %v478 = vpack.c.bf16 %v460, %v459
        %v479 = vpack.c.bf16 %v462, %v461
        %v480 = vpack.c.bf16 %v464, %v463
        %v481 = vld [vmem:[%s3] sm:$0xf]
        %v482 = vld [vmem:[%s3 + $0x4] sm:$0xf]
        %v483 = vld [vmem:[%s3 + $0x8] sm:$0xf]
        %v484 = vld [vmem:[%s3 + $0xc] sm:$0xf]
        %v485 = vld [vmem:[%s3 + $0x10] sm:$0xf]
        %v486 = vld [vmem:[%s3 + $0x14] sm:$0xf]
        %v487 = vld [vmem:[%s3 + $0x18] sm:$0xf]
        %v488 = vld [vmem:[%s3 + $0x1c] sm:$0xf]
        %v489 = vld [vmem:[%s3 + $0x20] sm:$0xf]
        %v490 = vld [vmem:[%s3 + $0x24] sm:$0xf]
        %v491 = vld [vmem:[%s3 + $0x28] sm:$0xf]
        %v492 = vld [vmem:[%s3 + $0x2c] sm:$0xf]
        %v493 = vld [vmem:[%s3 + $0x30] sm:$0xf]
        %v494 = vld [vmem:[%s3 + $0x34] sm:$0xf]
        %v495 = vld [vmem:[%s3 + $0x38] sm:$0xf]
        %v496 = vld [vmem:[%s3 + $0x3c] sm:$0xf]
        %v497 = vld [vmem:[%s4] sm:$0x1]
        %v499 = vperm.slane %v497, 0
        %v517 = vunpack.c.l.b16 %v481
        %v518 = vunpack.c.l.b16 %v482
        %v519 = vunpack.c.l.b16 %v483
        %v520 = vunpack.c.l.b16 %v484
        %v521 = vunpack.c.l.b16 %v485
        %v522 = vunpack.c.l.b16 %v486
        %v523 = vunpack.c.l.b16 %v487
        %v524 = vunpack.c.l.b16 %v488
        %v525 = vunpack.c.l.b16 %v489
        %v526 = vunpack.c.l.b16 %v490
        %v527 = vunpack.c.l.b16 %v491
        %v528 = vunpack.c.l.b16 %v492
        %v529 = vunpack.c.l.b16 %v493
        %v530 = vunpack.c.l.b16 %v494
        %v531 = vunpack.c.l.b16 %v495
        %v532 = vunpack.c.l.b16 %v496
        %v533 = vpack.c.b16 %v518, %v517
        %v534 = vpack.c.b16 %v520, %v519
        %v535 = vpack.c.b16 %v522, %v521
        %v536 = vpack.c.b16 %v524, %v523
        %v537 = vpack.c.b16 %v526, %v525
        %v538 = vpack.c.b16 %v528, %v527
        %v539 = vpack.c.b16 %v530, %v529
        %v540 = vpack.c.b16 %v532, %v531
        %549 = vmatpush.bf16.msra.mxu0 %v540
        %550 = vmatpush.bf16.msra.mxu0 %v539
        %551 = vmatpush.bf16.msra.mxu0 %v538
        %552 = vmatpush.bf16.msra.mxu0 %v537
        %553 = vmatpush.bf16.msra.mxu0 %v536
        %554 = vmatpush.bf16.msra.mxu0 %v535
        %555 = vmatpush.bf16.msra.mxu0 %v534
        %556 = vmatpush.bf16.msra.mxu0 %v533
        %557 = vmatmul.bf16.gmra.mxu0 %v465
        %v558 = vpop.f32.mrf.mxu0
        %v559 = vadd.f32 %v499, %v558
        %v560 = vpop.f32.mrf.mxu0
        %v561 = vadd.f32 %v499, %v560
        %562 = vmatmul.bf16.gmra.mxu0 %v466
        %v563 = vpop.f32.mrf.mxu0
        %v564 = vadd.f32 %v499, %v563
        %v565 = vpop.f32.mrf.mxu0
        %v566 = vadd.f32 %v499, %v565
        %567 = vmatmul.bf16.gmra.mxu0 %v467
        %v568 = vpop.f32.mrf.mxu0
        %v569 = vadd.f32 %v499, %v568
        %v570 = vpop.f32.mrf.mxu0
        %v571 = vadd.f32 %v499, %v570
        %572 = vmatmul.bf16.gmra.mxu0 %v468
        %v573 = vpop.f32.mrf.mxu0
        %v574 = vadd.f32 %v499, %v573
        %v575 = vpop.f32.mrf.mxu0
        %v576 = vadd.f32 %v499, %v575
        %577 = vmatmul.bf16.gmra.mxu0 %v469
        %v578 = vpop.f32.mrf.mxu0
        %v579 = vadd.f32 %v499, %v578
        %v580 = vpop.f32.mrf.mxu0
        %v581 = vadd.f32 %v499, %v580
        %582 = vmatmul.bf16.gmra.mxu0 %v470
        %v583 = vpop.f32.mrf.mxu0
        %v584 = vadd.f32 %v499, %v583
        %v585 = vpop.f32.mrf.mxu0
        %v586 = vadd.f32 %v499, %v585
        %587 = vmatmul.bf16.gmra.mxu0 %v471
        %v588 = vpop.f32.mrf.mxu0
        %v589 = vadd.f32 %v499, %v588
        %v590 = vpop.f32.mrf.mxu0
        %v591 = vadd.f32 %v499, %v590
        %592 = vmatmul.bf16.gmra.mxu0 %v472
        %v593 = vpop.f32.mrf.mxu0
        %v594 = vadd.f32 %v499, %v593
        %v595 = vpop.f32.mrf.mxu0
        %v596 = vadd.f32 %v499, %v595
        %597 = vmatmul.bf16.gmra.mxu0 %v473
        %v598 = vpop.f32.mrf.mxu0
        %v599 = vadd.f32 %v499, %v598
        %v600 = vpop.f32.mrf.mxu0
        %v601 = vadd.f32 %v499, %v600
        %602 = vmatmul.bf16.gmra.mxu0 %v474
        %v603 = vpop.f32.mrf.mxu0
        %v604 = vadd.f32 %v499, %v603
        %v605 = vpop.f32.mrf.mxu0
        %v606 = vadd.f32 %v499, %v605
        %607 = vmatmul.bf16.gmra.mxu0 %v475
        %v608 = vpop.f32.mrf.mxu0
        %v609 = vadd.f32 %v499, %v608
        %v610 = vpop.f32.mrf.mxu0
        %v611 = vadd.f32 %v499, %v610
        %612 = vmatmul.bf16.gmra.mxu0 %v476
        %v613 = vpop.f32.mrf.mxu0
        %v614 = vadd.f32 %v499, %v613
        %v615 = vpop.f32.mrf.mxu0
        %v616 = vadd.f32 %v499, %v615
        %617 = vmatmul.bf16.gmra.mxu0 %v477
        %v618 = vpop.f32.mrf.mxu0
        %v619 = vadd.f32 %v499, %v618
        %v620 = vpop.f32.mrf.mxu0
        %v621 = vadd.f32 %v499, %v620
        %622 = vmatmul.bf16.gmra.mxu0 %v478
        %v623 = vpop.f32.mrf.mxu0
        %v624 = vadd.f32 %v499, %v623
        %v625 = vpop.f32.mrf.mxu0
        %v626 = vadd.f32 %v499, %v625
        %627 = vmatmul.bf16.gmra.mxu0 %v479
        %v628 = vpop.f32.mrf.mxu0
        %v629 = vadd.f32 %v499, %v628
        %v630 = vpop.f32.mrf.mxu0
        %v631 = vadd.f32 %v499, %v630
        %632 = vmatmul.bf16.gmra.mxu0 %v480
        %v633 = vpop.f32.mrf.mxu0
        %v634 = vadd.f32 %v499, %v633
        %v635 = vpop.f32.mrf.mxu0
        %v636 = vadd.f32 %v499, %v635
        %637 = vdwg.mxu0
        %638 = vmax.xlane.f32.xlu0 %v559
        %v639 = vpop.xlane.xlu0 %638
        %640 = vmax.xlane.f32.xlu0 %v561
        %v641 = vpop.xlane.xlu0 %640
        %642 = vmax.xlane.f32.xlu0 %v564
        %v643 = vpop.xlane.xlu0 %642
        %644 = vmax.xlane.f32.xlu0 %v566
        %v645 = vpop.xlane.xlu0 %644
        %646 = vmax.xlane.f32.xlu0 %v569
        %v647 = vpop.xlane.xlu0 %646
        %648 = vmax.xlane.f32.xlu0 %v571
        %v649 = vpop.xlane.xlu0 %648
        %650 = vmax.xlane.f32.xlu0 %v574
        %v651 = vpop.xlane.xlu0 %650
        %652 = vmax.xlane.f32.xlu0 %v576
        %v653 = vpop.xlane.xlu0 %652
        %654 = vmax.xlane.f32.xlu0 %v579
        %v655 = vpop.xlane.xlu0 %654
        %656 = vmax.xlane.f32.xlu0 %v581
        %v657 = vpop.xlane.xlu0 %656
        %658 = vmax.xlane.f32.xlu0 %v584
        %v659 = vpop.xlane.xlu0 %658
        %660 = vmax.xlane.f32.xlu0 %v586
        %v661 = vpop.xlane.xlu0 %660
        %662 = vmax.xlane.f32.xlu0 %v589
        %v663 = vpop.xlane.xlu0 %662
        %664 = vmax.xlane.f32.xlu0 %v591
        %v665 = vpop.xlane.xlu0 %664
        %666 = vmax.xlane.f32.xlu0 %v594
        %v667 = vpop.xlane.xlu0 %666
        %668 = vmax.xlane.f32.xlu0 %v596
        %v669 = vpop.xlane.xlu0 %668
        %670 = vmax.xlane.f32.xlu0 %v599
        %v671 = vpop.xlane.xlu0 %670
        %672 = vmax.xlane.f32.xlu0 %v601
        %v673 = vpop.xlane.xlu0 %672
        %674 = vmax.xlane.f32.xlu0 %v604
        %v675 = vpop.xlane.xlu0 %674
        %676 = vmax.xlane.f32.xlu0 %v606
        %v677 = vpop.xlane.xlu0 %676
        %678 = vmax.xlane.f32.xlu0 %v609
        %v679 = vpop.xlane.xlu0 %678
        %680 = vmax.xlane.f32.xlu0 %v611
        %v681 = vpop.xlane.xlu0 %680
        %682 = vmax.xlane.f32.xlu0 %v614
        %v683 = vpop.xlane.xlu0 %682
        %684 = vmax.xlane.f32.xlu0 %v616
        %v685 = vpop.xlane.xlu0 %684
        %686 = vmax.xlane.f32.xlu0 %v619
        %v687 = vpop.xlane.xlu0 %686
        %688 = vmax.xlane.f32.xlu0 %v621
        %v689 = vpop.xlane.xlu0 %688
        %690 = vmax.xlane.f32.xlu0 %v624
        %v691 = vpop.xlane.xlu0 %690
        %692 = vmax.xlane.f32.xlu0 %v626
        %v693 = vpop.xlane.xlu0 %692
        %694 = vmax.xlane.f32.xlu0 %v629
        %v695 = vpop.xlane.xlu0 %694
        %696 = vmax.xlane.f32.xlu0 %v631
        %v697 = vpop.xlane.xlu0 %696
        %698 = vmax.xlane.f32.xlu0 %v634
        %v699 = vpop.xlane.xlu0 %698
        %700 = vmax.xlane.f32.xlu0 %v636
        %v701 = vpop.xlane.xlu0 %700
        %v702 = vsub.f32 %v559, %v639
        %v703 = vsub.f32 %v561, %v641
        %v704 = vsub.f32 %v564, %v643
        %v705 = vsub.f32 %v566, %v645
        %v706 = vsub.f32 %v569, %v647
        %v707 = vsub.f32 %v571, %v649
        %v708 = vsub.f32 %v574, %v651
        %v709 = vsub.f32 %v576, %v653
        %v710 = vsub.f32 %v579, %v655
        %v711 = vsub.f32 %v581, %v657
        %v712 = vsub.f32 %v584, %v659
        %v713 = vsub.f32 %v586, %v661
        %v714 = vsub.f32 %v589, %v663
        %v715 = vsub.f32 %v591, %v665
        %v716 = vsub.f32 %v594, %v667
        %v717 = vsub.f32 %v596, %v669
        %v718 = vsub.f32 %v599, %v671
        %v719 = vsub.f32 %v601, %v673
        %v720 = vsub.f32 %v604, %v675
        %v721 = vsub.f32 %v606, %v677
        %v722 = vsub.f32 %v609, %v679
        %v723 = vsub.f32 %v611, %v681
        %v724 = vsub.f32 %v614, %v683
        %v725 = vsub.f32 %v616, %v685
        %v726 = vsub.f32 %v619, %v687
        %v727 = vsub.f32 %v621, %v689
        %v728 = vsub.f32 %v624, %v691
        %v729 = vsub.f32 %v626, %v693
        %v730 = vsub.f32 %v629, %v695
        %v731 = vsub.f32 %v631, %v697
        %v732 = vsub.f32 %v634, %v699
        %v733 = vsub.f32 %v636, %v701
        %v734 = vmul.f32 %v702, 1.442695
        %v735 = vpow.pop %v734
        %v736 = vmul.f32 %v703, 1.442695
        %v737 = vpow.pop %v736
        %v738 = vmul.f32 %v704, 1.442695
        %v739 = vpow.pop %v738
        %v740 = vmul.f32 %v705, 1.442695
        %v741 = vpow.pop %v740
        %v742 = vmul.f32 %v706, 1.442695
        %v743 = vpow.pop %v742
        %v744 = vmul.f32 %v707, 1.442695
        %v745 = vpow.pop %v744
        %v746 = vmul.f32 %v708, 1.442695
        %v747 = vpow.pop %v746
        %v748 = vmul.f32 %v709, 1.442695
        %v749 = vpow.pop %v748
        %v750 = vmul.f32 %v710, 1.442695
        %v751 = vpow.pop %v750
        %v752 = vmul.f32 %v711, 1.442695
        %v753 = vpow.pop %v752
        %v754 = vmul.f32 %v712, 1.442695
        %v755 = vpow.pop %v754
        %v756 = vmul.f32 %v713, 1.442695
        %v757 = vpow.pop %v756
        %v758 = vmul.f32 %v714, 1.442695
        %v759 = vpow.pop %v758
        %v760 = vmul.f32 %v715, 1.442695
        %v761 = vpow.pop %v760
        %v762 = vmul.f32 %v716, 1.442695
        %v763 = vpow.pop %v762
        %v764 = vmul.f32 %v717, 1.442695
        %v765 = vpow.pop %v764
        %v766 = vmul.f32 %v718, 1.442695
        %v767 = vpow.pop %v766
        %v768 = vmul.f32 %v719, 1.442695
        %v769 = vpow.pop %v768
        %v770 = vmul.f32 %v720, 1.442695
        %v771 = vpow.pop %v770
        %v772 = vmul.f32 %v721, 1.442695
        %v773 = vpow.pop %v772
        %v774 = vmul.f32 %v722, 1.442695
        %v775 = vpow.pop %v774
        %v776 = vmul.f32 %v723, 1.442695
        %v777 = vpow.pop %v776
        %v778 = vmul.f32 %v724, 1.442695
        %v779 = vpow.pop %v778
        %v780 = vmul.f32 %v725, 1.442695
        %v781 = vpow.pop %v780
        %v782 = vmul.f32 %v726, 1.442695
        %v783 = vpow.pop %v782
        %v784 = vmul.f32 %v727, 1.442695
        %v785 = vpow.pop %v784
        %v786 = vmul.f32 %v728, 1.442695
        %v787 = vpow.pop %v786
        %v788 = vmul.f32 %v729, 1.442695
        %v789 = vpow.pop %v788
        %v790 = vmul.f32 %v730, 1.442695
        %v791 = vpow.pop %v790
        %v792 = vmul.f32 %v731, 1.442695
        %v793 = vpow.pop %v792
        %v794 = vmul.f32 %v732, 1.442695
        %v795 = vpow.pop %v794
        %v796 = vmul.f32 %v733, 1.442695
        %v797 = vpow.pop %v796
        %798 = vadd.xlane.f32.xlu0 %v735
        %v799 = vpop.xlane.xlu0 %798
        %800 = vadd.xlane.f32.xlu0 %v737
        %v801 = vpop.xlane.xlu0 %800
        %802 = vadd.xlane.f32.xlu0 %v739
        %v803 = vpop.xlane.xlu0 %802
        %804 = vadd.xlane.f32.xlu0 %v741
        %v805 = vpop.xlane.xlu0 %804
        %806 = vadd.xlane.f32.xlu0 %v743
        %v807 = vpop.xlane.xlu0 %806
        %808 = vadd.xlane.f32.xlu0 %v745
        %v809 = vpop.xlane.xlu0 %808
        %810 = vadd.xlane.f32.xlu0 %v747
        %v811 = vpop.xlane.xlu0 %810
        %812 = vadd.xlane.f32.xlu0 %v749
        %v813 = vpop.xlane.xlu0 %812
        %814 = vadd.xlane.f32.xlu0 %v751
        %v815 = vpop.xlane.xlu0 %814
        %816 = vadd.xlane.f32.xlu0 %v753
        %v817 = vpop.xlane.xlu0 %816
        %818 = vadd.xlane.f32.xlu0 %v755
        %v819 = vpop.xlane.xlu0 %818
        %820 = vadd.xlane.f32.xlu0 %v757
        %v821 = vpop.xlane.xlu0 %820
        %822 = vadd.xlane.f32.xlu0 %v759
        %v823 = vpop.xlane.xlu0 %822
        %824 = vadd.xlane.f32.xlu0 %v761
        %v825 = vpop.xlane.xlu0 %824
        %826 = vadd.xlane.f32.xlu0 %v763
        %v827 = vpop.xlane.xlu0 %826
        %828 = vadd.xlane.f32.xlu0 %v765
        %v829 = vpop.xlane.xlu0 %828
        %830 = vadd.xlane.f32.xlu0 %v767
        %v831 = vpop.xlane.xlu0 %830
        %832 = vadd.xlane.f32.xlu0 %v769
        %v833 = vpop.xlane.xlu0 %832
        %834 = vadd.xlane.f32.xlu0 %v771
        %v835 = vpop.xlane.xlu0 %834
        %836 = vadd.xlane.f32.xlu0 %v773
        %v837 = vpop.xlane.xlu0 %836
        %838 = vadd.xlane.f32.xlu0 %v775
        %v839 = vpop.xlane.xlu0 %838
        %840 = vadd.xlane.f32.xlu0 %v777
        %v841 = vpop.xlane.xlu0 %840
        %842 = vadd.xlane.f32.xlu0 %v779
        %v843 = vpop.xlane.xlu0 %842
        %844 = vadd.xlane.f32.xlu0 %v781
        %v845 = vpop.xlane.xlu0 %844
        %846 = vadd.xlane.f32.xlu0 %v783
        %v847 = vpop.xlane.xlu0 %846
        %848 = vadd.xlane.f32.xlu0 %v785
        %v849 = vpop.xlane.xlu0 %848
        %850 = vadd.xlane.f32.xlu0 %v787
        %v851 = vpop.xlane.xlu0 %850
        %852 = vadd.xlane.f32.xlu0 %v789
        %v853 = vpop.xlane.xlu0 %852
        %854 = vadd.xlane.f32.xlu0 %v791
        %v855 = vpop.xlane.xlu0 %854
        %856 = vadd.xlane.f32.xlu0 %v793
        %v857 = vpop.xlane.xlu0 %856
        %858 = vadd.xlane.f32.xlu0 %v795
        %v859 = vpop.xlane.xlu0 %858
        %860 = vadd.xlane.f32.xlu0 %v797
        %v861 = vpop.xlane.xlu0 %860
        %v862 = vlog2.pop %v799
        %v863 = vmul.f32 %v862, 0.6931472
        %v864 = vlog2.pop %v801
        %v865 = vmul.f32 %v864, 0.6931472
        %v866 = vlog2.pop %v803
        %v867 = vmul.f32 %v866, 0.6931472
        %v868 = vlog2.pop %v805
        %v869 = vmul.f32 %v868, 0.6931472
        %v870 = vlog2.pop %v807
        %v871 = vmul.f32 %v870, 0.6931472
        %v872 = vlog2.pop %v809
        %v873 = vmul.f32 %v872, 0.6931472
        %v874 = vlog2.pop %v811
        %v875 = vmul.f32 %v874, 0.6931472
        %v876 = vlog2.pop %v813
        %v877 = vmul.f32 %v876, 0.6931472
        %v878 = vlog2.pop %v815
        %v879 = vmul.f32 %v878, 0.6931472
        %v880 = vlog2.pop %v817
        %v881 = vmul.f32 %v880, 0.6931472
        %v882 = vlog2.pop %v819
        %v883 = vmul.f32 %v882, 0.6931472
        %v884 = vlog2.pop %v821
        %v885 = vmul.f32 %v884, 0.6931472
        %v886 = vlog2.pop %v823
        %v887 = vmul.f32 %v886, 0.6931472
        %v888 = vlog2.pop %v825
        %v889 = vmul.f32 %v888, 0.6931472
        %v890 = vlog2.pop %v827
        %v891 = vmul.f32 %v890, 0.6931472
        %v892 = vlog2.pop %v829
        %v893 = vmul.f32 %v892, 0.6931472
        %v894 = vlog2.pop %v831
        %v895 = vmul.f32 %v894, 0.6931472
        %v896 = vlog2.pop %v833
        %v897 = vmul.f32 %v896, 0.6931472
        %v898 = vlog2.pop %v835
        %v899 = vmul.f32 %v898, 0.6931472
        %v900 = vlog2.pop %v837
        %v901 = vmul.f32 %v900, 0.6931472
        %v902 = vlog2.pop %v839
        %v903 = vmul.f32 %v902, 0.6931472
        %v904 = vlog2.pop %v841
        %v905 = vmul.f32 %v904, 0.6931472
        %v906 = vlog2.pop %v843
        %v907 = vmul.f32 %v906, 0.6931472
        %v908 = vlog2.pop %v845
        %v909 = vmul.f32 %v908, 0.6931472
        %v910 = vlog2.pop %v847
        %v911 = vmul.f32 %v910, 0.6931472
        %v912 = vlog2.pop %v849
        %v913 = vmul.f32 %v912, 0.6931472
        %v914 = vlog2.pop %v851
        %v915 = vmul.f32 %v914, 0.6931472
        %v916 = vlog2.pop %v853
        %v917 = vmul.f32 %v916, 0.6931472
        %v918 = vlog2.pop %v855
        %v919 = vmul.f32 %v918, 0.6931472
        %v920 = vlog2.pop %v857
        %v921 = vmul.f32 %v920, 0.6931472
        %v922 = vlog2.pop %v859
        %v923 = vmul.f32 %v922, 0.6931472
        %v924 = vlog2.pop %v861
        %v925 = vmul.f32 %v924, 0.6931472
        %v926 = vsub.f32 %v702, %v863
        %v927 = vsub.f32 %v703, %v865
        %v928 = vsub.f32 %v704, %v867
        %v929 = vsub.f32 %v705, %v869
        %v930 = vsub.f32 %v706, %v871
        %v931 = vsub.f32 %v707, %v873
        %v932 = vsub.f32 %v708, %v875
        %v933 = vsub.f32 %v709, %v877
        %v934 = vsub.f32 %v710, %v879
        %v935 = vsub.f32 %v711, %v881
        %v936 = vsub.f32 %v712, %v883
        %v937 = vsub.f32 %v713, %v885
        %v938 = vsub.f32 %v714, %v887
        %v939 = vsub.f32 %v715, %v889
        %v940 = vsub.f32 %v716, %v891
        %v941 = vsub.f32 %v717, %v893
        %v942 = vsub.f32 %v718, %v895
        %v943 = vsub.f32 %v719, %v897
        %v944 = vsub.f32 %v720, %v899
        %v945 = vsub.f32 %v721, %v901
        %v946 = vsub.f32 %v722, %v903
        %v947 = vsub.f32 %v723, %v905
        %v948 = vsub.f32 %v724, %v907
        %v949 = vsub.f32 %v725, %v909
        %v950 = vsub.f32 %v726, %v911
        %v951 = vsub.f32 %v727, %v913
        %v952 = vsub.f32 %v728, %v915
        %v953 = vsub.f32 %v729, %v917
        %v954 = vsub.f32 %v730, %v919
        %v955 = vsub.f32 %v731, %v921
        %v956 = vsub.f32 %v732, %v923
        %v957 = vsub.f32 %v733, %v925
        %958 = vst [vmem:[%s218] sm:$0xff] %v926
        %959 = vst [vmem:[%s218 + $0x8] sm:$0xff] %v927
        %960 = vst [vmem:[%s218 + $0x10] sm:$0xff] %v928
        %961 = vst [vmem:[%s218 + $0x18] sm:$0xff] %v929
        %962 = vst [vmem:[%s218 + $0x20] sm:$0xff] %v930
        %963 = vst [vmem:[%s218 + $0x28] sm:$0xff] %v931
        %964 = vst [vmem:[%s218 + $0x30] sm:$0xff] %v932
        %965 = vst [vmem:[%s218 + $0x38] sm:$0xff] %v933
        %966 = vst [vmem:[%s218 + $0x40] sm:$0xff] %v934
        %967 = vst [vmem:[%s218 + $0x48] sm:$0xff] %v935
        %968 = vst [vmem:[%s218 + $0x50] sm:$0xff] %v936
        %969 = vst [vmem:[%s218 + $0x58] sm:$0xff] %v937
        %970 = vst [vmem:[%s218 + $0x60] sm:$0xff] %v938
        %971 = vst [vmem:[%s218 + $0x68] sm:$0xff] %v939
        %972 = vst [vmem:[%s218 + $0x70] sm:$0xff] %v940
        %973 = vst [vmem:[%s218 + $0x78] sm:$0xff] %v941
        %974 = vst [vmem:[%s218 + $0x80] sm:$0xff] %v942
        %975 = vst [vmem:[%s218 + $0x88] sm:$0xff] %v943
        %976 = vst [vmem:[%s218 + $0x90] sm:$0xff] %v944
        %977 = vst [vmem:[%s218 + $0x98] sm:$0xff] %v945
        %978 = vst [vmem:[%s218 + $0xa0] sm:$0xff] %v946
        %979 = vst [vmem:[%s218 + $0xa8] sm:$0xff] %v947
        %980 = vst [vmem:[%s218 + $0xb0] sm:$0xff] %v948
        %981 = vst [vmem:[%s218 + $0xb8] sm:$0xff] %v949
        %982 = vst [vmem:[%s218 + $0xc0] sm:$0xff] %v950
        %983 = vst [vmem:[%s218 + $0xc8] sm:$0xff] %v951
        %984 = vst [vmem:[%s218 + $0xd0] sm:$0xff] %v952
        %985 = vst [vmem:[%s218 + $0xd8] sm:$0xff] %v953
        %986 = vst [vmem:[%s218 + $0xe0] sm:$0xff] %v954
        %987 = vst [vmem:[%s218 + $0xe8] sm:$0xff] %v955
        %988 = vst [vmem:[%s218 + $0xf0] sm:$0xff] %v956
        %989 = vst [vmem:[%s218 + $0xf8] sm:$0xff] %v957
        %s990 = sand.u32 %s137, 1
        %s991 = scalar_lea.sflag [#allocation3], %s990
        %s992 = sand.u32 %s137, 1
        %s993 = smul.addr %s992, 256
        %s994 = scalar_lea.vmem [#allocation2], %s993
        // Predicated region
        $region41: #{tpu_custom_call.1} parent=39 // pred_check
          %p995 = pneg %p147
        $region42: #{tpu_custom_call.1} parent=39 // pred_check_branch
          %997 = sbr.rel (%p995) target = $region44
        $region43: #{tpu_custom_call.1} parent=39 // pred_region
          %s998 = smul.u32 32, %s19
          %1000 = vsyncadd %s991, 0
          %s1001 = smul.addr %s998, 8
          %s1002 = scalar_lea.hbm %s5, %s1001
          %s1003 = sshll.u32 %s994, 4
          %s1004 = int_to_ptr.vmem [resolvable:$true] %s1003
          %s1005 = sshll.u32 %s1002, 4
          %s1006 = int_to_ptr.hbm [resolvable:$true] %s1005
          %1011 = dma.vmem_to_hbm [thread:$0]  %s1004, 4096, %s1006, %s991, 128, 128, 8
        $region44: #{tpu_custom_call.1} parent=39 // pred_fallthru
          _
      $region40: #{tpu_custom_call.1} parent=5 // pred_fallthru
        _
      %p1012 = scmp.le.s32.totalorder 2, %s14
      // Predicated region
      $region45: #{tpu_custom_call.1} parent=5 // pred_check
        %p1013 = pneg %p1012
      $region46: #{tpu_custom_call.1} parent=5 // pred_check_branch
        %1015 = sbr.rel (%p1013) target = $region48
      $region47: #{tpu_custom_call.1} parent=5 // pred_region
        %s1016 = ssub.s32 %s14, 2
        // Predicated region
        $region49: #{tpu_custom_call.1} parent=47 // pred_check
          %p1017 = pneg %p153
        $region50: #{tpu_custom_call.1} parent=47 // pred_check_branch
          %1019 = sbr.rel (%p1017) target = $region52
        $region51: #{tpu_custom_call.1} parent=47 // pred_region
          %s1020 = sand.u32 %s138, 1
          %s1021 = scalar_lea.sflag [#allocation3], %s1020
          %s1022 = sand.u32 %s138, 1
          %s1023 = smul.addr %s1022, 256
          %s1024 = scalar_lea.vmem [#allocation2], %s1023
          %1026 = dma.done %s1021, 4096
        $region52: #{tpu_custom_call.1} parent=47 // pred_fallthru
          _
      $region48: #{tpu_custom_call.1} parent=5 // pred_fallthru
        _
    $region6: #{tpu_custom_call.1} parent=1 // loop_footer
      %s18 = sadd.s32 1, %s14
    $region7: #{tpu_custom_call.1} parent=1 // loop_footer_branch
      %13 = sbr.rel target = $region3
    $region8: #{tpu_custom_call.1} parent=1 // loop_exit
      _
    %1027 = vsyncpa [#allocation3], 1
    %s1028 = scalar_lea.sflag [#allocation3], 1
    %1029 = vsyncpa %s1028, 1

</llo_original>
